<compile_context>
chip_gen: v5e
topology: v5e:2x2
jax: 0.10.0
libtpu: 0.0.40
codegen_flags: <defaults>
</compile_context>

<pallas_src>
import functools

import jax
import jax.numpy as jnp
from jax.experimental import pallas as pl
from jax.experimental.pallas import tpu as pltpu


def _round_up(v, m):
    return (v + m - 1) // m * m


def _dueling_kernel(x_ref,       # (TB, M*S)      VMEM  flattened, lane-padded input slab
                    wconv_ref,   # (4, M)         SMEM  rows: [val0, val1, adv0, adv1]
                    bconv_ref,   # (4,)           SMEM
                    wlin_ref,    # (4*S, A_pad)   VMEM  merged + dueling-folded linear W
                    blin_ref,    # (1, A_pad)     VMEM  merged + dueling-folded linear b
                    out_ref,     # (TB, A_pad)    VMEM
                    h_ref,       # (TB, 4*S)      VMEM scratch (ReLU'd head features)
                    *, S):
    n_head = wconv_ref.shape[0]          # 4 = 2 value + 2 advantage conv channels
    M = wconv_ref.shape[1]

    # 1x1 convs: loop over input channel OUTER so each (TB, S) x slab is loaded once and
    # FMA'd (VPU) into all 4 head accumulators.
    x0 = x_ref[:, 0:S]
    h = [bconv_ref[c] + wconv_ref[c, 0] * x0 for c in range(n_head)]
    for m in range(1, M):
        xm = x_ref[:, m * S:(m + 1) * S]
        for c in range(n_head):
            h[c] = h[c] + wconv_ref[c, m] * xm

    # ReLU into the staging buffer (lane-aligned slices: S % 128 == 0 by construction).
    for c in range(n_head):
        h_ref[:, c * S:(c + 1) * S] = jnp.maximum(h[c], 0.0)

    # Single MXU matmul over K = 4*S; the dueling combine is already folded into the
    # packed weights/bias, so this is the entire head.
    out_ref[...] = (blin_ref[...] +
                    jnp.dot(h_ref[...], wlin_ref[...],
                            preferred_element_type=jnp.float32)).astype(out_ref.dtype)


def _choose_tb(B, M, S_pad, A_pad, vmem_budget_bytes, tb_cap):
    """Pick the batch tile: VMEM-budgeted, >=2 grid steps when possible, low padding."""
    # Per-batch-row VMEM bytes: x slab (double-buffered), staging scratch, out (double-buf).
    row_bytes = (2 * M * S_pad + 4 * S_pad + 2 * A_pad) * 4
    # Resident merged weight/bias (double-buffered by the pipeline even though constant).
    fixed_bytes = 2 * (4 * S_pad * A_pad + A_pad) * 4
    budget_rows = max(8, (vmem_budget_bytes - fixed_bytes) // row_bytes)
    tb_max = max(8, min(tb_cap, (budget_rows // 8) * 8))
    # Choose a step count first (>= 2 when the batch allows, so v7x can shard the batch
    # axis across its 2 TensorCores), then size TB to just cover B so remainder padding
    # stays under 8 rows per step.
    n_steps = max(2 if B > 8 else 1, pl.cdiv(B, tb_max))
    tb = _round_up(pl.cdiv(B, n_steps), 8)
    return min(tb, tb_max)


def dueling_head_conv(x_nchw, kparams, *,
                      vmem_budget_bytes=48 * 1024 * 1024, tb_cap=1024):
    """x_nchw: (B, M, K, K) float32 (PyTorch NCHW). Returns Q: (B, A) float32."""
    B, M, K1, K2 = x_nchw.shape
    S = K1 * K2
    assert S == kparams["flat_features"]
    S_pad = kparams["spatial_pad"]
    A = int(kparams["num_actions"])
    wconv, bconv = kparams["conv_w"], kparams["conv_b"]
    wlin, blin = kparams["lin_w"], kparams["lin_b"]
    A_pad = wlin.shape[-1]

    # Channel-major flatten (matches nn.Flatten on NCHW) with per-channel lane padding so
    # every in-kernel slice is (8,128)-aligned; padded positions hit zero weight rows.
    x3 = x_nchw.reshape(B, M, S)
    if S_pad != S:
        x3 = jnp.pad(x3, ((0, 0), (0, 0), (0, S_pad - S)))
    x_flat = x3.reshape(B, M * S_pad)

    TB = _choose_tb(B, M, S_pad, A_pad, vmem_budget_bytes, tb_cap)
    B_pad = _round_up(B, TB)
    if B_pad != B:
        x_flat = jnp.pad(x_flat, ((0, B_pad - B), (0, 0)))
    grid = (B_pad // TB,)

    kernel = functools.partial(_dueling_kernel, S=S_pad)

    flops = 2 * B_pad * (4 * M * S_pad + 4 * S_pad * A_pad)
    bytes_accessed = (B_pad * M * S_pad + B_pad * A_pad + wlin.size + blin.size
                      + wconv.size + bconv.size) * 4

    out = pl.pallas_call(
        kernel,
        out_shape=jax.ShapeDtypeStruct((B_pad, A_pad), jnp.float32),
        grid_spec=pltpu.PrefetchScalarGridSpec(
            num_scalar_prefetch=0,
            grid=grid,
            in_specs=[
                pl.BlockSpec((TB, M * S_pad), lambda i: (i, 0)),        # x slab (streamed)
                pl.BlockSpec(memory_space=pltpu.MemorySpace.SMEM),      # conv weights
                pl.BlockSpec(memory_space=pltpu.MemorySpace.SMEM),      # conv biases
                pl.BlockSpec((4 * S_pad, A_pad), lambda i: (0, 0)),     # merged W (resident)
                pl.BlockSpec((1, A_pad), lambda i: (0, 0)),             # merged b (resident)
            ],
            out_specs=pl.BlockSpec((TB, A_pad), lambda i: (i, 0)),
            scratch_shapes=[pltpu.VMEM((TB, 4 * S_pad), jnp.float32)],  # ReLU'd features
        ),
        compiler_params=pltpu.CompilerParams(
            dimension_semantics=("parallel",),
            vmem_limit_bytes=vmem_budget_bytes,
        ),
        cost_estimate=pl.CostEstimate(flops=flops, transcendentals=0,
                                      bytes_accessed=bytes_accessed),
    )(x_flat, wconv, bconv, wlin, blin)

    return out[:B, :A]


def init_params(key, main_channels, flat_features, num_actions):
    """Deterministic synthetic parameters with PyTorch-module shapes."""
    hc = 2
    ks = jax.random.split(key, 8)
    s = 0.1
    return dict(
        conv_val_w=s * jax.random.normal(ks[0], (hc, main_channels), jnp.float32),  # (2, M)
        conv_val_b=s * jax.random.normal(ks[1], (hc,), jnp.float32),
        conv_adv_w=s * jax.random.normal(ks[2], (hc, main_channels), jnp.float32),
        conv_adv_b=s * jax.random.normal(ks[3], (hc,), jnp.float32),
        lin_val_w=s * jax.random.normal(ks[4], (1, flat_features * hc), jnp.float32),   # (1, 2S)
        lin_val_b=s * jax.random.normal(ks[5], (1,), jnp.float32),
        lin_adv_w=s * jax.random.normal(ks[6], (num_actions, flat_features * hc), jnp.float32),
        lin_adv_b=s * jax.random.normal(ks[7], (num_actions,), jnp.float32),
    )


def pack_params(p, flat_features, num_actions):
    """Repack PyTorch-shaped params into the kernel's merged, dueling-folded layout."""
    S, A = flat_features, num_actions
    S_pad = _round_up(S, 128)                 # lane-pad each channel's spatial block
    A_pad = _round_up(max(A, 1), 128)         # lane-dense action columns

    conv_w = jnp.concatenate([p["conv_val_w"], p["conv_adv_w"]], axis=0)   # (4, M)
    conv_b = jnp.concatenate([p["conv_val_b"], p["conv_adv_b"]], axis=0)   # (4,)

    w_val = p["lin_val_w"][0]                 # (2S,)   [chan0 | chan1] spatial
    b_val = p["lin_val_b"][0]                 # scalar
    w_adv = p["lin_adv_w"]                    # (A, 2S)
    b_adv = p["lin_adv_b"]                    # (A,)

    # Fold the dueling combine Q = V + (A - mean(A)) into the weights (exact numerics):
    w_adv_c = w_adv - jnp.mean(w_adv, axis=0, keepdims=True)               # (A, 2S)
    b_fold = b_adv - jnp.mean(b_adv) + b_val                               # (A,)

    lin_w = jnp.zeros((4 * S_pad, A_pad), jnp.float32)
    # Value-head features (conv channels 0,1): W_val broadcast to every action column.
    lin_w = lin_w.at[0 * S_pad:0 * S_pad + S, 0:A].set(
        jnp.broadcast_to(w_val[0:S, None], (S, A)))
    lin_w = lin_w.at[1 * S_pad:1 * S_pad + S, 0:A].set(
        jnp.broadcast_to(w_val[S:2 * S, None], (S, A)))
    # Advantage-head features (conv channels 0,1): mean-centered W_adv.
    lin_w = lin_w.at[2 * S_pad:2 * S_pad + S, 0:A].set(w_adv_c[:, 0:S].T)
    lin_w = lin_w.at[3 * S_pad:3 * S_pad + S, 0:A].set(w_adv_c[:, S:2 * S].T)

    lin_b = jnp.zeros((1, A_pad), jnp.float32).at[0, 0:A].set(b_fold)

    return dict(conv_w=conv_w, conv_b=conv_b, lin_w=lin_w, lin_b=lin_b,
                num_actions=A, flat_features=S, spatial_pad=S_pad)


def reference(x_nchw, p):
    """Pure-JAX replica of the PyTorch forward."""
    B = x_nchw.shape[0]
    v = jnp.einsum("om,bmhw->bohw", p["conv_val_w"], x_nchw) + p["conv_val_b"][None, :, None, None]
    v = jnp.maximum(v, 0.0).reshape(B, -1)
    V = v @ p["lin_val_w"].T + p["lin_val_b"]
    a = jnp.einsum("om,bmhw->bohw", p["conv_adv_w"], x_nchw) + p["conv_adv_b"][None, :, None, None]
    a = jnp.maximum(a, 0.0).reshape(B, -1)
    Aq = a @ p["lin_adv_w"].T + p["lin_adv_b"]
    return V + (Aq - Aq.mean(axis=1, keepdims=True))


def _run_case(key, B, M, K, A):
    S = K * K
    k_x, k_p = jax.random.split(key)
    x = jax.random.normal(k_x, (B, M, K, K), jnp.float32)
    params = init_params(k_p, main_channels=M, flat_features=S, num_actions=A)
    kparams = pack_params(params, flat_features=S, num_actions=A)
    q = jax.block_until_ready(dueling_head_conv(x, kparams))
    q_ref = reference(x, params)
    assert q.shape == (B, A)
    err = float(jnp.max(jnp.abs(q - q_ref)))
    assert jnp.allclose(q, q_ref, atol=2e-3, rtol=2e-3), err
    return err


if __name__ == "__main__":
    key = jax.random.PRNGKey(0)
    k1, k2 = jax.random.split(key)

    # Primary case (spec-sized): batch=2, main_channels=4, K=16 (S=256), num_actions=8.
    _run_case(k1, B=2, M=4, K=16, A=8)

    # Secondary case: exercises multi-step batch tiling, remainder padding, and the
    # lane-padded (S not a multiple of 128) path.
    _run_case(k2, B=19, M=3, K=12, A=5)

    print("KERNEL_OK")
</pallas_src>

<mosaic_0001>
module attributes {stable_mosaic.version = 11 : i64} {
  func.func @_dueling_kernel(%arg0: i32, %arg1: memref<8x1024xf32, #tpu.memory_space<vmem>>, %arg2: memref<4x4xf32, #tpu.memory_space<smem>>, %arg3: memref<4xf32, #tpu.memory_space<smem>>, %arg4: memref<1024x128xf32, #tpu.memory_space<vmem>>, %arg5: memref<1x128xf32, #tpu.memory_space<vmem>>, %arg6: memref<8x128xf32, #tpu.memory_space<vmem>>, %arg7: memref<8x1024xf32, #tpu.memory_space<vmem>>) attributes {dimension_semantics = [#tpu.dimension_semantics<parallel>], iteration_bounds = array<i64: 1>, scalar_prefetch = 0 : i64, scratch_operands = 1 : i64, tpu.core_type = #tpu.core_type<tc>, window_params = [{transform_indices = @transform_0, window_bounds = array<i64: 8, 1024>}, {transform_indices = @transform_1, window_bounds = array<i64: 4, 4>}, {transform_indices = @transform_2, window_bounds = array<i64: 4>}, {pipeline_mode = #tpu.pipeline_mode<synchronous>, transform_indices = @transform_3, window_bounds = array<i64: 1024, 128>}, {pipeline_mode = #tpu.pipeline_mode<synchronous>, transform_indices = @transform_4, window_bounds = array<i64: 1, 128>}, {transform_indices = @transform_5, window_bounds = array<i64: 8, 128>}]} {
    %c0 = arith.constant 0 : index
    %c0_0 = arith.constant 0 : index
    %0 = vector.load %arg1[%c0, %c0_0] : memref<8x1024xf32, #tpu.memory_space<vmem>>, vector<8x256xf32>
    %c0_1 = arith.constant 0 : index
    %1 = memref.load %arg3[%c0_1] : memref<4xf32, #tpu.memory_space<smem>>
    %c0_2 = arith.constant 0 : index
    %c0_3 = arith.constant 0 : index
    %2 = memref.load %arg2[%c0_2, %c0_3] : memref<4x4xf32, #tpu.memory_space<smem>>
    %3 = vector.broadcast %2 : f32 to vector<8x256xf32>
    %4 = arith.mulf %3, %0 : vector<8x256xf32>
    %5 = vector.broadcast %1 : f32 to vector<8x256xf32>
    %6 = arith.addf %5, %4 : vector<8x256xf32>
    %c1 = arith.constant 1 : index
    %7 = memref.load %arg3[%c1] : memref<4xf32, #tpu.memory_space<smem>>
    %c1_4 = arith.constant 1 : index
    %c0_5 = arith.constant 0 : index
    %8 = memref.load %arg2[%c1_4, %c0_5] : memref<4x4xf32, #tpu.memory_space<smem>>
    %9 = vector.broadcast %8 : f32 to vector<8x256xf32>
    %10 = arith.mulf %9, %0 : vector<8x256xf32>
    %11 = vector.broadcast %7 : f32 to vector<8x256xf32>
    %12 = arith.addf %11, %10 : vector<8x256xf32>
    %c2 = arith.constant 2 : index
    %13 = memref.load %arg3[%c2] : memref<4xf32, #tpu.memory_space<smem>>
    %c2_6 = arith.constant 2 : index
    %c0_7 = arith.constant 0 : index
    %14 = memref.load %arg2[%c2_6, %c0_7] : memref<4x4xf32, #tpu.memory_space<smem>>
    %15 = vector.broadcast %14 : f32 to vector<8x256xf32>
    %16 = arith.mulf %15, %0 : vector<8x256xf32>
    %17 = vector.broadcast %13 : f32 to vector<8x256xf32>
    %18 = arith.addf %17, %16 : vector<8x256xf32>
    %c3 = arith.constant 3 : index
    %19 = memref.load %arg3[%c3] : memref<4xf32, #tpu.memory_space<smem>>
    %c3_8 = arith.constant 3 : index
    %c0_9 = arith.constant 0 : index
    %20 = memref.load %arg2[%c3_8, %c0_9] : memref<4x4xf32, #tpu.memory_space<smem>>
    %21 = vector.broadcast %20 : f32 to vector<8x256xf32>
    %22 = arith.mulf %21, %0 : vector<8x256xf32>
    %23 = vector.broadcast %19 : f32 to vector<8x256xf32>
    %24 = arith.addf %23, %22 : vector<8x256xf32>
    %c0_10 = arith.constant 0 : index
    %c256 = arith.constant 256 : index
    %25 = vector.load %arg1[%c0_10, %c256] : memref<8x1024xf32, #tpu.memory_space<vmem>>, vector<8x256xf32>
    %c0_11 = arith.constant 0 : index
    %c1_12 = arith.constant 1 : index
    %26 = memref.load %arg2[%c0_11, %c1_12] : memref<4x4xf32, #tpu.memory_space<smem>>
    %27 = vector.broadcast %26 : f32 to vector<8x256xf32>
    %28 = arith.mulf %27, %25 : vector<8x256xf32>
    %29 = arith.addf %6, %28 : vector<8x256xf32>
    %c1_13 = arith.constant 1 : index
    %c1_14 = arith.constant 1 : index
    %30 = memref.load %arg2[%c1_13, %c1_14] : memref<4x4xf32, #tpu.memory_space<smem>>
    %31 = vector.broadcast %30 : f32 to vector<8x256xf32>
    %32 = arith.mulf %31, %25 : vector<8x256xf32>
    %33 = arith.addf %12, %32 : vector<8x256xf32>
    %c2_15 = arith.constant 2 : index
    %c1_16 = arith.constant 1 : index
    %34 = memref.load %arg2[%c2_15, %c1_16] : memref<4x4xf32, #tpu.memory_space<smem>>
    %35 = vector.broadcast %34 : f32 to vector<8x256xf32>
    %36 = arith.mulf %35, %25 : vector<8x256xf32>
    %37 = arith.addf %18, %36 : vector<8x256xf32>
    %c3_17 = arith.constant 3 : index
    %c1_18 = arith.constant 1 : index
    %38 = memref.load %arg2[%c3_17, %c1_18] : memref<4x4xf32, #tpu.memory_space<smem>>
    %39 = vector.broadcast %38 : f32 to vector<8x256xf32>
    %40 = arith.mulf %39, %25 : vector<8x256xf32>
    %41 = arith.addf %24, %40 : vector<8x256xf32>
    %c0_19 = arith.constant 0 : index
    %c512 = arith.constant 512 : index
    %42 = vector.load %arg1[%c0_19, %c512] : memref<8x1024xf32, #tpu.memory_space<vmem>>, vector<8x256xf32>
    %c0_20 = arith.constant 0 : index
    %c2_21 = arith.constant 2 : index
    %43 = memref.load %arg2[%c0_20, %c2_21] : memref<4x4xf32, #tpu.memory_space<smem>>
    %44 = vector.broadcast %43 : f32 to vector<8x256xf32>
    %45 = arith.mulf %44, %42 : vector<8x256xf32>
    %46 = arith.addf %29, %45 : vector<8x256xf32>
    %c1_22 = arith.constant 1 : index
    %c2_23 = arith.constant 2 : index
    %47 = memref.load %arg2[%c1_22, %c2_23] : memref<4x4xf32, #tpu.memory_space<smem>>
    %48 = vector.broadcast %47 : f32 to vector<8x256xf32>
    %49 = arith.mulf %48, %42 : vector<8x256xf32>
    %50 = arith.addf %33, %49 : vector<8x256xf32>
    %c2_24 = arith.constant 2 : index
    %c2_25 = arith.constant 2 : index
    %51 = memref.load %arg2[%c2_24, %c2_25] : memref<4x4xf32, #tpu.memory_space<smem>>
    %52 = vector.broadcast %51 : f32 to vector<8x256xf32>
    %53 = arith.mulf %52, %42 : vector<8x256xf32>
    %54 = arith.addf %37, %53 : vector<8x256xf32>
    %c3_26 = arith.constant 3 : index
    %c2_27 = arith.constant 2 : index
    %55 = memref.load %arg2[%c3_26, %c2_27] : memref<4x4xf32, #tpu.memory_space<smem>>
    %56 = vector.broadcast %55 : f32 to vector<8x256xf32>
    %57 = arith.mulf %56, %42 : vector<8x256xf32>
    %58 = arith.addf %41, %57 : vector<8x256xf32>
    %c0_28 = arith.constant 0 : index
    %c768 = arith.constant 768 : index
    %59 = vector.load %arg1[%c0_28, %c768] : memref<8x1024xf32, #tpu.memory_space<vmem>>, vector<8x256xf32>
    %c0_29 = arith.constant 0 : index
    %c3_30 = arith.constant 3 : index
    %60 = memref.load %arg2[%c0_29, %c3_30] : memref<4x4xf32, #tpu.memory_space<smem>>
    %61 = vector.broadcast %60 : f32 to vector<8x256xf32>
    %62 = arith.mulf %61, %59 : vector<8x256xf32>
    %63 = arith.addf %46, %62 : vector<8x256xf32>
    %c1_31 = arith.constant 1 : index
    %c3_32 = arith.constant 3 : index
    %64 = memref.load %arg2[%c1_31, %c3_32] : memref<4x4xf32, #tpu.memory_space<smem>>
    %65 = vector.broadcast %64 : f32 to vector<8x256xf32>
    %66 = arith.mulf %65, %59 : vector<8x256xf32>
    %67 = arith.addf %50, %66 : vector<8x256xf32>
    %c2_33 = arith.constant 2 : index
    %c3_34 = arith.constant 3 : index
    %68 = memref.load %arg2[%c2_33, %c3_34] : memref<4x4xf32, #tpu.memory_space<smem>>
    %69 = vector.broadcast %68 : f32 to vector<8x256xf32>
    %70 = arith.mulf %69, %59 : vector<8x256xf32>
    %71 = arith.addf %54, %70 : vector<8x256xf32>
    %c3_35 = arith.constant 3 : index
    %c3_36 = arith.constant 3 : index
    %72 = memref.load %arg2[%c3_35, %c3_36] : memref<4x4xf32, #tpu.memory_space<smem>>
    %73 = vector.broadcast %72 : f32 to vector<8x256xf32>
    %74 = arith.mulf %73, %59 : vector<8x256xf32>
    %75 = arith.addf %58, %74 : vector<8x256xf32>
    %cst = arith.constant 0.000000e+00 : f32
    %76 = vector.broadcast %cst : f32 to vector<8x256xf32>
    %77 = arith.maximumf %63, %76 : vector<8x256xf32>
    %c0_37 = arith.constant 0 : index
    %c0_38 = arith.constant 0 : index
    %78 = vector.load %arg7[%c0_37, %c0_38] : memref<8x1024xf32, #tpu.memory_space<vmem>>, vector<8x256xf32>
    tpu.vector_store %arg7[%c0_37, %c0_38], %77 {strides = array<i32>} : memref<8x1024xf32, #tpu.memory_space<vmem>>, vector<8x256xf32>,
    %cst_39 = arith.constant 0.000000e+00 : f32
    %79 = vector.broadcast %cst_39 : f32 to vector<8x256xf32>
    %80 = arith.maximumf %67, %79 : vector<8x256xf32>
    %c0_40 = arith.constant 0 : index
    %c256_41 = arith.constant 256 : index
    %81 = vector.load %arg7[%c0_40, %c256_41] : memref<8x1024xf32, #tpu.memory_space<vmem>>, vector<8x256xf32>
    tpu.vector_store %arg7[%c0_40, %c256_41], %80 {strides = array<i32>} : memref<8x1024xf32, #tpu.memory_space<vmem>>, vector<8x256xf32>,
    %cst_42 = arith.constant 0.000000e+00 : f32
    %82 = vector.broadcast %cst_42 : f32 to vector<8x256xf32>
    %83 = arith.maximumf %71, %82 : vector<8x256xf32>
    %c0_43 = arith.constant 0 : index
    %c512_44 = arith.constant 512 : index
    %84 = vector.load %arg7[%c0_43, %c512_44] : memref<8x1024xf32, #tpu.memory_space<vmem>>, vector<8x256xf32>
    tpu.vector_store %arg7[%c0_43, %c512_44], %83 {strides = array<i32>} : memref<8x1024xf32, #tpu.memory_space<vmem>>, vector<8x256xf32>,
    %cst_45 = arith.constant 0.000000e+00 : f32
    %85 = vector.broadcast %cst_45 : f32 to vector<8x256xf32>
    %86 = arith.maximumf %75, %85 : vector<8x256xf32>
    %c0_46 = arith.constant 0 : index
    %c768_47 = arith.constant 768 : index
    %87 = vector.load %arg7[%c0_46, %c768_47] : memref<8x1024xf32, #tpu.memory_space<vmem>>, vector<8x256xf32>
    tpu.vector_store %arg7[%c0_46, %c768_47], %86 {strides = array<i32>} : memref<8x1024xf32, #tpu.memory_space<vmem>>, vector<8x256xf32>,
    %c0_48 = arith.constant 0 : index
    %c0_49 = arith.constant 0 : index
    %88 = vector.load %arg5[%c0_48, %c0_49] : memref<1x128xf32, #tpu.memory_space<vmem>>, vector<1x128xf32>
    %c0_50 = arith.constant 0 : index
    %c0_51 = arith.constant 0 : index
    %89 = vector.load %arg7[%c0_50, %c0_51] : memref<8x1024xf32, #tpu.memory_space<vmem>>, vector<8x1024xf32>
    %c0_52 = arith.constant 0 : index
    %c0_53 = arith.constant 0 : index
    %90 = vector.load %arg4[%c0_52, %c0_53] : memref<1024x128xf32, #tpu.memory_space<vmem>>, vector<1024x128xf32>
    %cst_54 = arith.constant dense<0.000000e+00> : vector<8x128xf32>
    %91 = tpu.matmul %89, %90, %cst_54 {dimension_numbers = #tpu.dot_dimension_numbers<[1], [0], [0], [1], [0, 0, 1, 1], [], []>} : vector<8x1024xf32>, vector<1024x128xf32>, vector<8x128xf32> -> vector<8x128xf32>
    %92 = vector.broadcast %88 : vector<1x128xf32> to vector<8x128xf32>
    %93 = arith.addf %92, %91 : vector<8x128xf32>
    %c0_55 = arith.constant 0 : index
    %c0_56 = arith.constant 0 : index
    %94 = vector.load %arg6[%c0_55, %c0_56] : memref<8x128xf32, #tpu.memory_space<vmem>>, vector<8x128xf32>
    tpu.vector_store %arg6[%c0_55, %c0_56], %93 {strides = array<i32>} : memref<8x128xf32, #tpu.memory_space<vmem>>, vector<8x128xf32>,
    return
  }
  func.func @transform_0(%arg0: i32) -> (i32, i32) {
    %c0_i32 = arith.constant 0 : i32
    %c0_i32_0 = arith.constant 0 : i32
    return %arg0, %c0_i32 : i32, i32
  }
  func.func @transform_1(%arg0: i32) -> (i32, i32) {
    %c0_i32 = arith.constant 0 : i32
    %c0_i32_0 = arith.constant 0 : i32
    %c0_i32_1 = arith.constant 0 : i32
    return %c0_i32, %c0_i32_0 : i32, i32
  }
  func.func @transform_2(%arg0: i32) -> i32 {
    %c0_i32 = arith.constant 0 : i32
    %c0_i32_0 = arith.constant 0 : i32
    return %c0_i32 : i32
  }
  func.func @transform_3(%arg0: i32) -> (i32, i32) {
    %c0_i32 = arith.constant 0 : i32
    %c0_i32_0 = arith.constant 0 : i32
    %c0_i32_1 = arith.constant 0 : i32
    return %c0_i32, %c0_i32_0 : i32, i32
  }
  func.func @transform_4(%arg0: i32) -> (i32, i32) {
    %c0_i32 = arith.constant 0 : i32
    %c0_i32_0 = arith.constant 0 : i32
    %c0_i32_1 = arith.constant 0 : i32
    return %c0_i32, %c0_i32_0 : i32, i32
  }
  func.func @transform_5(%arg0: i32) -> (i32, i32) {
    %c0_i32 = arith.constant 0 : i32
    %c0_i32_0 = arith.constant 0 : i32
    return %arg0, %c0_i32 : i32, i32
  }
}

</mosaic_0001>

<llo_original>
// kernel: tpu_custom_call.1
$region0: #{tpu_custom_call.1}
  #allocation0 [shape = 'u32[]', space=smem, size = 0x4, offset = 0x4, fixed_abs, tag = 'smem constant byte address 0x4 - core index']
  #allocation1 [shape = 'u32[72,128]{1,0:T(1,128)}', space=vmem, size = 0x9000, scoped, tag = 'internal scratch']
  #allocation2 [shape = 'f32[8,1024]{1,0:T(8,128)}', space=vmem, size = 0x8000, scoped, tag = 'scratch operand']
  %s0 = inlined_call_operand.hbm [shape: f32[8,1024], index: 0, kind: input, shape index: {}]
  %s1 = inlined_call_operand.hbm [shape: f32[4,4], index: 1, kind: input, shape index: {}]
  %s2 = inlined_call_operand.vmem [shape: f32[4], index: 2, kind: input, shape index: {}]
  %s3 = inlined_call_operand.hbm [shape: f32[1024,128], index: 3, kind: input, shape index: {}]
  %s4 = inlined_call_operand.vmem [shape: f32[1,128], index: 4, kind: input, shape index: {}]
  %s5 = inlined_call_operand.hbm [shape: f32[8,128], index: 5, kind: output, shape index: {}]
  %s6 = sld [smem:[#allocation0]]
  $region46: #{tpu_custom_call.1} parent=0
    _
  %s8 = ssub.s32 1, %s6
  %s9 = scalar_select 0, %s8, %s6
  $region1: #{tpu_custom_call.1} parent=0
    #allocation3 [shape = 'u8[32768]{0}', space=vmem, size = 0x8000, scoped, tag = 'input window, operand 0, single buffered']
    #allocation4 [shape = 's32[1]{0}', space=sflag, size = 0x4, scoped, tag = 'scoped memory for tpu_custom_call.1']
    #allocation5 [shape = 's32[1]{0}', space=sflag, size = 0x4, scoped, tag = 'scoped memory for tpu_custom_call.1']
    #allocation6 [shape = 's32[1]{0}', space=sflag, size = 0x4, scoped, tag = 'scoped memory for tpu_custom_call.1']
    #allocation7 [shape = 's32[1]{0}', space=sflag, size = 0x4, scoped, tag = 'scoped memory for tpu_custom_call.1']
    #allocation8 [shape = 'u8[2048]{0}', space=smem, size = 0x800, scoped, tag = 'input window, operand 1, single buffered']
    #allocation9 [shape = 'u8[512]{0}', space=smem, size = 0x200, scoped, tag = 'input window, operand 2, single buffered']
    #allocation10 [shape = 'u8[524288]{0}', space=vmem, size = 0x80000, scoped, tag = 'input window, operand 3, single buffered']
    #allocation11 [shape = 's32[1]{0}', space=sflag, size = 0x4, scoped, tag = 'scoped memory for tpu_custom_call.1']
    #allocation12 [shape = 'u8[4096]{0}', space=vmem, size = 0x1000, scoped, tag = 'output window, operand 0, single buffered']
    %10 = vsyncpa [#allocation4], 0
    %11 = vsyncpa [#allocation6], 0
    %12 = vsyncpa [#allocation7], 0
    %13 = vsyncpa [#allocation11], 0
    %14 = vsyncpa [#allocation5], 0
    // Predicated region
    $region2: #{tpu_custom_call.1} parent=1 // pred_check
      _
    $region3: #{tpu_custom_call.1} parent=1 // pred_check_branch
      %16 = sbr.rel (0) target = $region5
    $region4: #{tpu_custom_call.1} parent=1 // pred_region
      %18 = vsyncadd [#allocation4], 0
      %s20 = sshll.u32 %s0, 4
      %s21 = int_to_ptr.hbm [resolvable:$true] %s20
      %s22 = sshll.u32 [#allocation3], 4
      %s23 = int_to_ptr.vmem [resolvable:$true] %s22
      %25 = dma.hbm_to_vmem [thread:$0]  %s21, 1024, %s23, [#allocation4]
    $region5: #{tpu_custom_call.1} parent=1 // pred_fallthru
      _
    // Predicated region
    $region6: #{tpu_custom_call.1} parent=1 // pred_check
      _
    $region7: #{tpu_custom_call.1} parent=1 // pred_check_branch
      %27 = sbr.rel (0) target = $region9
    $region8: #{tpu_custom_call.1} parent=1 // pred_region
      %29 = vsyncadd [#allocation6], 0
      %s31 = sshll.u32 %s1, 4
      %s32 = int_to_ptr.hbm [resolvable:$true] %s31
      %34 = dma.hbm_to_smem %s32, 64, [#allocation8], [#allocation6]
    $region9: #{tpu_custom_call.1} parent=1 // pred_fallthru
      _
    // Predicated region
    $region10: #{tpu_custom_call.1} parent=1 // pred_check
      _
    $region11: #{tpu_custom_call.1} parent=1 // pred_check_branch
      %36 = sbr.rel (0) target = $region13
    $region12: #{tpu_custom_call.1} parent=1 // pred_region
      %38 = vsyncadd [#allocation7], 0
      %s40 = sshll.u32 %s2, 4
      %s41 = int_to_ptr.vmem [resolvable:$true] %s40
      %43 = dma.vmem_to_smem %s41, 16, [#allocation9], [#allocation7]
    $region13: #{tpu_custom_call.1} parent=1 // pred_fallthru
      _
    // Predicated region
    $region14: #{tpu_custom_call.1} parent=1 // pred_check
      _
    $region15: #{tpu_custom_call.1} parent=1 // pred_check_branch
      %45 = sbr.rel (0) target = $region17
    $region16: #{tpu_custom_call.1} parent=1 // pred_region
      %47 = vsyncadd [#allocation11], 0
      %s48 = sshll.u32 %s3, 4
      %s49 = int_to_ptr.hbm [resolvable:$true] %s48
      %s50 = sshll.u32 [#allocation10], 4
      %s51 = int_to_ptr.vmem [resolvable:$true] %s50
      %56 = dma.hbm_to_vmem [thread:$0]  %s49, 16384, %s51, [#allocation11], 128, 128, 8
    $region17: #{tpu_custom_call.1} parent=1 // pred_fallthru
      _
    // Predicated region
    $region18: #{tpu_custom_call.1} parent=1 // pred_check
      _
    $region19: #{tpu_custom_call.1} parent=1 // pred_check_branch
      %58 = sbr.rel (0) target = $region21
    $region20: #{tpu_custom_call.1} parent=1 // pred_region
      _
    $region21: #{tpu_custom_call.1} parent=1 // pred_fallthru
      _
    // Predicated region
    $region22: #{tpu_custom_call.1} parent=1 // pred_check
      _
    $region23: #{tpu_custom_call.1} parent=1 // pred_check_branch
      %60 = sbr.rel (0) target = $region25
    $region24: #{tpu_custom_call.1} parent=1 // pred_region
      %62 = dma.done [#allocation4], 1024
    $region25: #{tpu_custom_call.1} parent=1 // pred_fallthru
      _
    // Predicated region
    $region26: #{tpu_custom_call.1} parent=1 // pred_check
      _
    $region27: #{tpu_custom_call.1} parent=1 // pred_check_branch
      %64 = sbr.rel (0) target = $region29
    $region28: #{tpu_custom_call.1} parent=1 // pred_region
      %66 = dma.done [#allocation6], 64
    $region29: #{tpu_custom_call.1} parent=1 // pred_fallthru
      _
    // Predicated region
    $region30: #{tpu_custom_call.1} parent=1 // pred_check
      _
    $region31: #{tpu_custom_call.1} parent=1 // pred_check_branch
      %68 = sbr.rel (0) target = $region33
    $region32: #{tpu_custom_call.1} parent=1 // pred_region
      %70 = dma.done [#allocation7], 16
    $region33: #{tpu_custom_call.1} parent=1 // pred_fallthru
      _
    // Predicated region
    $region34: #{tpu_custom_call.1} parent=1 // pred_check
      _
    $region35: #{tpu_custom_call.1} parent=1 // pred_check_branch
      %72 = sbr.rel (0) target = $region37
    $region36: #{tpu_custom_call.1} parent=1 // pred_region
      %74 = dma.done [#allocation11], 16384
    $region37: #{tpu_custom_call.1} parent=1 // pred_fallthru
      _
    %75 = sfence
    %v76 = vld [vmem:[#allocation3] sm:$0xff]
    %v77 = vld [vmem:[#allocation3 + $0x8] sm:$0xff]
    %s78 = sld [smem:[#allocation9]]
    %s79 = sld [smem:[#allocation8]]
    %v80 = vstv %s79
    %v81 = vmul.f32 %v80, %v76
    %v82 = vmul.f32 %v80, %v77
    %v83 = vstv %s78
    %v84 = vadd.f32 %v83, %v81
    %v85 = vadd.f32 %v83, %v82
    %s86 = sld [smem:[#allocation9 + $0x1]]
    %s87 = sld [smem:[#allocation8 + $0x80]]
    %v88 = vstv %s87
    %v89 = vmul.f32 %v88, %v76
    %v90 = vmul.f32 %v88, %v77
    %v91 = vstv %s86
    %v92 = vadd.f32 %v91, %v89
    %v93 = vadd.f32 %v91, %v90
    %s94 = sld [smem:[#allocation9 + $0x2]]
    %s95 = sld [smem:[#allocation8 + $0x100]]
    %v96 = vstv %s95
    %v97 = vmul.f32 %v96, %v76
    %v98 = vmul.f32 %v96, %v77
    %v99 = vstv %s94
    %v100 = vadd.f32 %v99, %v97
    %v101 = vadd.f32 %v99, %v98
    %s102 = sld [smem:[#allocation9 + $0x3]]
    %s103 = sld [smem:[#allocation8 + $0x180]]
    %v104 = vstv %s103
    %v105 = vmul.f32 %v104, %v76
    %v106 = vmul.f32 %v104, %v77
    %v107 = vstv %s102
    %v108 = vadd.f32 %v107, %v105
    %v109 = vadd.f32 %v107, %v106
    %v110 = vld [vmem:[#allocation3 + $0x10] sm:$0xff]
    %v111 = vld [vmem:[#allocation3 + $0x18] sm:$0xff]
    %s112 = sld [smem:[#allocation8 + $0x1]]
    %v113 = vstv %s112
    %v114 = vmul.f32 %v113, %v110
    %v115 = vmul.f32 %v113, %v111
    %v116 = vadd.f32 %v84, %v114
    %v117 = vadd.f32 %v85, %v115
    %s118 = sld [smem:[#allocation8 + $0x81]]
    %v119 = vstv %s118
    %v120 = vmul.f32 %v119, %v110
    %v121 = vmul.f32 %v119, %v111
    %v122 = vadd.f32 %v92, %v120
    %v123 = vadd.f32 %v93, %v121
    %s124 = sld [smem:[#allocation8 + $0x101]]
    %v125 = vstv %s124
    %v126 = vmul.f32 %v125, %v110
    %v127 = vmul.f32 %v125, %v111
    %v128 = vadd.f32 %v100, %v126
    %v129 = vadd.f32 %v101, %v127
    %s130 = sld [smem:[#allocation8 + $0x181]]
    %v131 = vstv %s130
    %v132 = vmul.f32 %v131, %v110
    %v133 = vmul.f32 %v131, %v111
    %v134 = vadd.f32 %v108, %v132
    %v135 = vadd.f32 %v109, %v133
    %v136 = vld [vmem:[#allocation3 + $0x20] sm:$0xff]
    %v137 = vld [vmem:[#allocation3 + $0x28] sm:$0xff]
    %s138 = sld [smem:[#allocation8 + $0x2]]
    %v139 = vstv %s138
    %v140 = vmul.f32 %v139, %v136
    %v141 = vmul.f32 %v139, %v137
    %v142 = vadd.f32 %v116, %v140
    %v143 = vadd.f32 %v117, %v141
    %s144 = sld [smem:[#allocation8 + $0x82]]
    %v145 = vstv %s144
    %v146 = vmul.f32 %v145, %v136
    %v147 = vmul.f32 %v145, %v137
    %v148 = vadd.f32 %v122, %v146
    %v149 = vadd.f32 %v123, %v147
    %s150 = sld [smem:[#allocation8 + $0x102]]
    %v151 = vstv %s150
    %v152 = vmul.f32 %v151, %v136
    %v153 = vmul.f32 %v151, %v137
    %v154 = vadd.f32 %v128, %v152
    %v155 = vadd.f32 %v129, %v153
    %s156 = sld [smem:[#allocation8 + $0x182]]
    %v157 = vstv %s156
    %v158 = vmul.f32 %v157, %v136
    %v159 = vmul.f32 %v157, %v137
    %v160 = vadd.f32 %v134, %v158
    %v161 = vadd.f32 %v135, %v159
    %v162 = vld [vmem:[#allocation3 + $0x30] sm:$0xff]
    %v163 = vld [vmem:[#allocation3 + $0x38] sm:$0xff]
    %s164 = sld [smem:[#allocation8 + $0x3]]
    %v165 = vstv %s164
    %v166 = vmul.f32 %v165, %v162
    %v167 = vmul.f32 %v165, %v163
    %v168 = vadd.f32 %v142, %v166
    %v169 = vadd.f32 %v143, %v167
    %s170 = sld [smem:[#allocation8 + $0x83]]
    %v171 = vstv %s170
    %v172 = vmul.f32 %v171, %v162
    %v173 = vmul.f32 %v171, %v163
    %v174 = vadd.f32 %v148, %v172
    %v175 = vadd.f32 %v149, %v173
    %s176 = sld [smem:[#allocation8 + $0x103]]
    %v177 = vstv %s176
    %v178 = vmul.f32 %v177, %v162
    %v179 = vmul.f32 %v177, %v163
    %v180 = vadd.f32 %v154, %v178
    %v181 = vadd.f32 %v155, %v179
    %s182 = sld [smem:[#allocation8 + $0x183]]
    %v183 = vstv %s182
    %v184 = vmul.f32 %v183, %v162
    %v185 = vmul.f32 %v183, %v163
    %v186 = vadd.f32 %v160, %v184
    %v187 = vadd.f32 %v161, %v185
    %v188 = vmax.f32 %v168, 0.0
    %v189 = vmax.f32 %v169, 0.0
    %190 = vst [vmem:[#allocation2] sm:$0xff] %v188
    %191 = vst [vmem:[#allocation2 + $0x8] sm:$0xff] %v189
    %v192 = vmax.f32 %v174, 0.0
    %v193 = vmax.f32 %v175, 0.0
    %194 = vst [vmem:[#allocation2 + $0x10] sm:$0xff] %v192
    %195 = vst [vmem:[#allocation2 + $0x18] sm:$0xff] %v193
    %v196 = vmax.f32 %v180, 0.0
    %v197 = vmax.f32 %v181, 0.0
    %198 = vst [vmem:[#allocation2 + $0x20] sm:$0xff] %v196
    %199 = vst [vmem:[#allocation2 + $0x28] sm:$0xff] %v197
    %v200 = vmax.f32 %v186, 0.0
    %v201 = vmax.f32 %v187, 0.0
    %202 = vst [vmem:[#allocation2 + $0x30] sm:$0xff] %v200
    %203 = vst [vmem:[#allocation2 + $0x38] sm:$0xff] %v201
    %v204 = vld [vmem:[%s4] sm:$0x1]
    %v205 = vld [vmem:[#allocation2] sm:$0xff]
    %v206 = vld [vmem:[#allocation2 + $0x8] sm:$0xff]
    %v207 = vld [vmem:[#allocation2 + $0x10] sm:$0xff]
    %v208 = vld [vmem:[#allocation2 + $0x18] sm:$0xff]
    %v209 = vld [vmem:[#allocation2 + $0x20] sm:$0xff]
    %v210 = vld [vmem:[#allocation2 + $0x28] sm:$0xff]
    %v211 = vld [vmem:[#allocation2 + $0x30] sm:$0xff]
    %v212 = vld [vmem:[#allocation2 + $0x38] sm:$0xff]
    %v213 = vld [vmem:[#allocation10] sm:$0xff]
    %v214 = vld [vmem:[#allocation10 + $0x8] sm:$0xff]
    %v215 = vld [vmem:[#allocation10 + $0x10] sm:$0xff]
    %v216 = vld [vmem:[#allocation10 + $0x18] sm:$0xff]
    %v217 = vld [vmem:[#allocation10 + $0x20] sm:$0xff]
    %v218 = vld [vmem:[#allocation10 + $0x28] sm:$0xff]
    %v219 = vld [vmem:[#allocation10 + $0x30] sm:$0xff]
    %v220 = vld [vmem:[#allocation10 + $0x38] sm:$0xff]
    %v221 = vld [vmem:[#allocation10 + $0x40] sm:$0xff]
    %v222 = vld [vmem:[#allocation10 + $0x48] sm:$0xff]
    %v223 = vld [vmem:[#allocation10 + $0x50] sm:$0xff]
    %v224 = vld [vmem:[#allocation10 + $0x58] sm:$0xff]
    %v225 = vld [vmem:[#allocation10 + $0x60] sm:$0xff]
    %v226 = vld [vmem:[#allocation10 + $0x68] sm:$0xff]
    %v227 = vld [vmem:[#allocation10 + $0x70] sm:$0xff]
    %v228 = vld [vmem:[#allocation10 + $0x78] sm:$0xff]
    %v229 = vld [vmem:[#allocation10 + $0x80] sm:$0xff]
    %v230 = vld [vmem:[#allocation10 + $0x88] sm:$0xff]
    %v231 = vld [vmem:[#allocation10 + $0x90] sm:$0xff]
    %v232 = vld [vmem:[#allocation10 + $0x98] sm:$0xff]
    %v233 = vld [vmem:[#allocation10 + $0xa0] sm:$0xff]
    %v234 = vld [vmem:[#allocation10 + $0xa8] sm:$0xff]
    %v235 = vld [vmem:[#allocation10 + $0xb0] sm:$0xff]
    %v236 = vld [vmem:[#allocation10 + $0xb8] sm:$0xff]
    %v237 = vld [vmem:[#allocation10 + $0xc0] sm:$0xff]
    %v238 = vld [vmem:[#allocation10 + $0xc8] sm:$0xff]
    %v239 = vld [vmem:[#allocation10 + $0xd0] sm:$0xff]
    %v240 = vld [vmem:[#allocation10 + $0xd8] sm:$0xff]
    %v241 = vld [vmem:[#allocation10 + $0xe0] sm:$0xff]
    %v242 = vld [vmem:[#allocation10 + $0xe8] sm:$0xff]
    %v243 = vld [vmem:[#allocation10 + $0xf0] sm:$0xff]
    %v244 = vld [vmem:[#allocation10 + $0xf8] sm:$0xff]
    %v245 = vld [vmem:[#allocation10 + $0x100] sm:$0xff]
    %v246 = vld [vmem:[#allocation10 + $0x108] sm:$0xff]
    %v247 = vld [vmem:[#allocation10 + $0x110] sm:$0xff]
    %v248 = vld [vmem:[#allocation10 + $0x118] sm:$0xff]
    %v249 = vld [vmem:[#allocation10 + $0x120] sm:$0xff]
    %v250 = vld [vmem:[#allocation10 + $0x128] sm:$0xff]
    %v251 = vld [vmem:[#allocation10 + $0x130] sm:$0xff]
    %v252 = vld [vmem:[#allocation10 + $0x138] sm:$0xff]
    %v253 = vld [vmem:[#allocation10 + $0x140] sm:$0xff]
    %v254 = vld [vmem:[#allocation10 + $0x148] sm:$0xff]
    %v255 = vld [vmem:[#allocation10 + $0x150] sm:$0xff]
    %v256 = vld [vmem:[#allocation10 + $0x158] sm:$0xff]
    %v257 = vld [vmem:[#allocation10 + $0x160] sm:$0xff]
    %v258 = vld [vmem:[#allocation10 + $0x168] sm:$0xff]
    %v259 = vld [vmem:[#allocation10 + $0x170] sm:$0xff]
    %v260 = vld [vmem:[#allocation10 + $0x178] sm:$0xff]
    %v261 = vld [vmem:[#allocation10 + $0x180] sm:$0xff]
    %v262 = vld [vmem:[#allocation10 + $0x188] sm:$0xff]
    %v263 = vld [vmem:[#allocation10 + $0x190] sm:$0xff]
    %v264 = vld [vmem:[#allocation10 + $0x198] sm:$0xff]
    %v265 = vld [vmem:[#allocation10 + $0x1a0] sm:$0xff]
    %v266 = vld [vmem:[#allocation10 + $0x1a8] sm:$0xff]
    %v267 = vld [vmem:[#allocation10 + $0x1b0] sm:$0xff]
    %v268 = vld [vmem:[#allocation10 + $0x1b8] sm:$0xff]
    %v269 = vld [vmem:[#allocation10 + $0x1c0] sm:$0xff]
    %v270 = vld [vmem:[#allocation10 + $0x1c8] sm:$0xff]
    %v271 = vld [vmem:[#allocation10 + $0x1d0] sm:$0xff]
    %v272 = vld [vmem:[#allocation10 + $0x1d8] sm:$0xff]
    %v273 = vld [vmem:[#allocation10 + $0x1e0] sm:$0xff]
    %v274 = vld [vmem:[#allocation10 + $0x1e8] sm:$0xff]
    %v275 = vld [vmem:[#allocation10 + $0x1f0] sm:$0xff]
    %v276 = vld [vmem:[#allocation10 + $0x1f8] sm:$0xff]
    %v277 = vld [vmem:[#allocation10 + $0x200] sm:$0xff]
    %v278 = vld [vmem:[#allocation10 + $0x208] sm:$0xff]
    %v279 = vld [vmem:[#allocation10 + $0x210] sm:$0xff]
    %v280 = vld [vmem:[#allocation10 + $0x218] sm:$0xff]
    %v281 = vld [vmem:[#allocation10 + $0x220] sm:$0xff]
    %v282 = vld [vmem:[#allocation10 + $0x228] sm:$0xff]
    %v283 = vld [vmem:[#allocation10 + $0x230] sm:$0xff]
    %v284 = vld [vmem:[#allocation10 + $0x238] sm:$0xff]
    %v285 = vld [vmem:[#allocation10 + $0x240] sm:$0xff]
    %v286 = vld [vmem:[#allocation10 + $0x248] sm:$0xff]
    %v287 = vld [vmem:[#allocation10 + $0x250] sm:$0xff]
    %v288 = vld [vmem:[#allocation10 + $0x258] sm:$0xff]
    %v289 = vld [vmem:[#allocation10 + $0x260] sm:$0xff]
    %v290 = vld [vmem:[#allocation10 + $0x268] sm:$0xff]
    %v291 = vld [vmem:[#allocation10 + $0x270] sm:$0xff]
    %v292 = vld [vmem:[#allocation10 + $0x278] sm:$0xff]
    %v293 = vld [vmem:[#allocation10 + $0x280] sm:$0xff]
    %v294 = vld [vmem:[#allocation10 + $0x288] sm:$0xff]
    %v295 = vld [vmem:[#allocation10 + $0x290] sm:$0xff]
    %v296 = vld [vmem:[#allocation10 + $0x298] sm:$0xff]
    %v297 = vld [vmem:[#allocation10 + $0x2a0] sm:$0xff]
    %v298 = vld [vmem:[#allocation10 + $0x2a8] sm:$0xff]
    %v299 = vld [vmem:[#allocation10 + $0x2b0] sm:$0xff]
    %v300 = vld [vmem:[#allocation10 + $0x2b8] sm:$0xff]
    %v301 = vld [vmem:[#allocation10 + $0x2c0] sm:$0xff]
    %v302 = vld [vmem:[#allocation10 + $0x2c8] sm:$0xff]
    %v303 = vld [vmem:[#allocation10 + $0x2d0] sm:$0xff]
    %v304 = vld [vmem:[#allocation10 + $0x2d8] sm:$0xff]
    %v305 = vld [vmem:[#allocation10 + $0x2e0] sm:$0xff]
    %v306 = vld [vmem:[#allocation10 + $0x2e8] sm:$0xff]
    %v307 = vld [vmem:[#allocation10 + $0x2f0] sm:$0xff]
    %v308 = vld [vmem:[#allocation10 + $0x2f8] sm:$0xff]
    %v309 = vld [vmem:[#allocation10 + $0x300] sm:$0xff]
    %v310 = vld [vmem:[#allocation10 + $0x308] sm:$0xff]
    %v311 = vld [vmem:[#allocation10 + $0x310] sm:$0xff]
    %v312 = vld [vmem:[#allocation10 + $0x318] sm:$0xff]
    %v313 = vld [vmem:[#allocation10 + $0x320] sm:$0xff]
    %v314 = vld [vmem:[#allocation10 + $0x328] sm:$0xff]
    %v315 = vld [vmem:[#allocation10 + $0x330] sm:$0xff]
    %v316 = vld [vmem:[#allocation10 + $0x338] sm:$0xff]
    %v317 = vld [vmem:[#allocation10 + $0x340] sm:$0xff]
    %v318 = vld [vmem:[#allocation10 + $0x348] sm:$0xff]
    %v319 = vld [vmem:[#allocation10 + $0x350] sm:$0xff]
    %v320 = vld [vmem:[#allocation10 + $0x358] sm:$0xff]
    %v321 = vld [vmem:[#allocation10 + $0x360] sm:$0xff]
    %v322 = vld [vmem:[#allocation10 + $0x368] sm:$0xff]
    %v323 = vld [vmem:[#allocation10 + $0x370] sm:$0xff]
    %v324 = vld [vmem:[#allocation10 + $0x378] sm:$0xff]
    %v325 = vld [vmem:[#allocation10 + $0x380] sm:$0xff]
    %v326 = vld [vmem:[#allocation10 + $0x388] sm:$0xff]
    %v327 = vld [vmem:[#allocation10 + $0x390] sm:$0xff]
    %v328 = vld [vmem:[#allocation10 + $0x398] sm:$0xff]
    %v329 = vld [vmem:[#allocation10 + $0x3a0] sm:$0xff]
    %v330 = vld [vmem:[#allocation10 + $0x3a8] sm:$0xff]
    %v331 = vld [vmem:[#allocation10 + $0x3b0] sm:$0xff]
    %v332 = vld [vmem:[#allocation10 + $0x3b8] sm:$0xff]
    %v333 = vld [vmem:[#allocation10 + $0x3c0] sm:$0xff]
    %v334 = vld [vmem:[#allocation10 + $0x3c8] sm:$0xff]
    %v335 = vld [vmem:[#allocation10 + $0x3d0] sm:$0xff]
    %v336 = vld [vmem:[#allocation10 + $0x3d8] sm:$0xff]
    %v337 = vld [vmem:[#allocation10 + $0x3e0] sm:$0xff]
    %v338 = vld [vmem:[#allocation10 + $0x3e8] sm:$0xff]
    %v339 = vld [vmem:[#allocation10 + $0x3f0] sm:$0xff]
    %v340 = vld [vmem:[#allocation10 + $0x3f8] sm:$0xff]
    %341 = vmatpush.msra.mxu0 %v228
    %342 = vmatpush.msra.mxu0 %v227
    %343 = vmatpush.msra.mxu0 %v226
    %344 = vmatpush.msra.mxu0 %v225
    %345 = vmatpush.msra.mxu0 %v224
    %346 = vmatpush.msra.mxu0 %v223
    %347 = vmatpush.msra.mxu0 %v222
    %348 = vmatpush.msra.mxu0 %v221
    %349 = vmatpush.msra.mxu0 %v220
    %350 = vmatpush.msra.mxu0 %v219
    %351 = vmatpush.msra.mxu0 %v218
    %352 = vmatpush.msra.mxu0 %v217
    %353 = vmatpush.msra.mxu0 %v216
    %354 = vmatpush.msra.mxu0 %v215
    %355 = vmatpush.msra.mxu0 %v214
    %356 = vmatpush.msra.mxu0 %v213
    %357 = vmatmul.f32.gmra.mxu0 %v205
    %v358 = vpop.f32.mrf.mxu0
    %v359 = vadd.f32 0.0, %v358
    %360 = vdwg.mxu0
    %361 = vmatpush.msra.mxu0 %v244
    %362 = vmatpush.msra.mxu0 %v243
    %363 = vmatpush.msra.mxu0 %v242
    %364 = vmatpush.msra.mxu0 %v241
    %365 = vmatpush.msra.mxu0 %v240
    %366 = vmatpush.msra.mxu0 %v239
    %367 = vmatpush.msra.mxu0 %v238
    %368 = vmatpush.msra.mxu0 %v237
    %369 = vmatpush.msra.mxu0 %v236
    %370 = vmatpush.msra.mxu0 %v235
    %371 = vmatpush.msra.mxu0 %v234
    %372 = vmatpush.msra.mxu0 %v233
    %373 = vmatpush.msra.mxu0 %v232
    %374 = vmatpush.msra.mxu0 %v231
    %375 = vmatpush.msra.mxu0 %v230
    %376 = vmatpush.msra.mxu0 %v229
    %377 = vmatmul.f32.gmra.mxu0 %v206
    %v378 = vpop.f32.mrf.mxu0
    %v379 = vadd.f32 %v359, %v378
    %380 = vdwg.mxu0
    %381 = vmatpush.msra.mxu0 %v260
    %382 = vmatpush.msra.mxu0 %v259
    %383 = vmatpush.msra.mxu0 %v258
    %384 = vmatpush.msra.mxu0 %v257
    %385 = vmatpush.msra.mxu0 %v256
    %386 = vmatpush.msra.mxu0 %v255
    %387 = vmatpush.msra.mxu0 %v254
    %388 = vmatpush.msra.mxu0 %v253
    %389 = vmatpush.msra.mxu0 %v252
    %390 = vmatpush.msra.mxu0 %v251
    %391 = vmatpush.msra.mxu0 %v250
    %392 = vmatpush.msra.mxu0 %v249
    %393 = vmatpush.msra.mxu0 %v248
    %394 = vmatpush.msra.mxu0 %v247
    %395 = vmatpush.msra.mxu0 %v246
    %396 = vmatpush.msra.mxu0 %v245
    %397 = vmatmul.f32.gmra.mxu0 %v207
    %v398 = vpop.f32.mrf.mxu0
    %v399 = vadd.f32 %v379, %v398
    %400 = vdwg.mxu0
    %401 = vmatpush.msra.mxu0 %v276
    %402 = vmatpush.msra.mxu0 %v275
    %403 = vmatpush.msra.mxu0 %v274
    %404 = vmatpush.msra.mxu0 %v273
    %405 = vmatpush.msra.mxu0 %v272
    %406 = vmatpush.msra.mxu0 %v271
    %407 = vmatpush.msra.mxu0 %v270
    %408 = vmatpush.msra.mxu0 %v269
    %409 = vmatpush.msra.mxu0 %v268
    %410 = vmatpush.msra.mxu0 %v267
    %411 = vmatpush.msra.mxu0 %v266
    %412 = vmatpush.msra.mxu0 %v265
    %413 = vmatpush.msra.mxu0 %v264
    %414 = vmatpush.msra.mxu0 %v263
    %415 = vmatpush.msra.mxu0 %v262
    %416 = vmatpush.msra.mxu0 %v261
    %417 = vmatmul.f32.gmra.mxu0 %v208
    %v418 = vpop.f32.mrf.mxu0
    %v419 = vadd.f32 %v399, %v418
    %420 = vdwg.mxu0
    %421 = vmatpush.msra.mxu0 %v292
    %422 = vmatpush.msra.mxu0 %v291
    %423 = vmatpush.msra.mxu0 %v290
    %424 = vmatpush.msra.mxu0 %v289
    %425 = vmatpush.msra.mxu0 %v288
    %426 = vmatpush.msra.mxu0 %v287
    %427 = vmatpush.msra.mxu0 %v286
    %428 = vmatpush.msra.mxu0 %v285
    %429 = vmatpush.msra.mxu0 %v284
    %430 = vmatpush.msra.mxu0 %v283
    %431 = vmatpush.msra.mxu0 %v282
    %432 = vmatpush.msra.mxu0 %v281
    %433 = vmatpush.msra.mxu0 %v280
    %434 = vmatpush.msra.mxu0 %v279
    %435 = vmatpush.msra.mxu0 %v278
    %436 = vmatpush.msra.mxu0 %v277
    %437 = vmatmul.f32.gmra.mxu0 %v209
    %v438 = vpop.f32.mrf.mxu0
    %v439 = vadd.f32 %v419, %v438
    %440 = vdwg.mxu0
    %441 = vmatpush.msra.mxu0 %v308
    %442 = vmatpush.msra.mxu0 %v307
    %443 = vmatpush.msra.mxu0 %v306
    %444 = vmatpush.msra.mxu0 %v305
    %445 = vmatpush.msra.mxu0 %v304
    %446 = vmatpush.msra.mxu0 %v303
    %447 = vmatpush.msra.mxu0 %v302
    %448 = vmatpush.msra.mxu0 %v301
    %449 = vmatpush.msra.mxu0 %v300
    %450 = vmatpush.msra.mxu0 %v299
    %451 = vmatpush.msra.mxu0 %v298
    %452 = vmatpush.msra.mxu0 %v297
    %453 = vmatpush.msra.mxu0 %v296
    %454 = vmatpush.msra.mxu0 %v295
    %455 = vmatpush.msra.mxu0 %v294
    %456 = vmatpush.msra.mxu0 %v293
    %457 = vmatmul.f32.gmra.mxu0 %v210
    %v458 = vpop.f32.mrf.mxu0
    %v459 = vadd.f32 %v439, %v458
    %460 = vdwg.mxu0
    %461 = vmatpush.msra.mxu0 %v324
    %462 = vmatpush.msra.mxu0 %v323
    %463 = vmatpush.msra.mxu0 %v322
    %464 = vmatpush.msra.mxu0 %v321
    %465 = vmatpush.msra.mxu0 %v320
    %466 = vmatpush.msra.mxu0 %v319
    %467 = vmatpush.msra.mxu0 %v318
    %468 = vmatpush.msra.mxu0 %v317
    %469 = vmatpush.msra.mxu0 %v316
    %470 = vmatpush.msra.mxu0 %v315
    %471 = vmatpush.msra.mxu0 %v314
    %472 = vmatpush.msra.mxu0 %v313
    %473 = vmatpush.msra.mxu0 %v312
    %474 = vmatpush.msra.mxu0 %v311
    %475 = vmatpush.msra.mxu0 %v310
    %476 = vmatpush.msra.mxu0 %v309
    %477 = vmatmul.f32.gmra.mxu0 %v211
    %v478 = vpop.f32.mrf.mxu0
    %v479 = vadd.f32 %v459, %v478
    %480 = vdwg.mxu0
    %481 = vmatpush.msra.mxu0 %v340
    %482 = vmatpush.msra.mxu0 %v339
    %483 = vmatpush.msra.mxu0 %v338
    %484 = vmatpush.msra.mxu0 %v337
    %485 = vmatpush.msra.mxu0 %v336
    %486 = vmatpush.msra.mxu0 %v335
    %487 = vmatpush.msra.mxu0 %v334
    %488 = vmatpush.msra.mxu0 %v333
    %489 = vmatpush.msra.mxu0 %v332
    %490 = vmatpush.msra.mxu0 %v331
    %491 = vmatpush.msra.mxu0 %v330
    %492 = vmatpush.msra.mxu0 %v329
    %493 = vmatpush.msra.mxu0 %v328
    %494 = vmatpush.msra.mxu0 %v327
    %495 = vmatpush.msra.mxu0 %v326
    %496 = vmatpush.msra.mxu0 %v325
    %497 = vmatmul.f32.gmra.mxu0 %v212
    %v498 = vpop.f32.mrf.mxu0
    %v499 = vadd.f32 %v479, %v498
    %500 = vdwg.mxu0
    %v502 = vperm.slane %v204, 0
    %v504 = vadd.f32 %v502, %v499
    %505 = vst [vmem:[#allocation12] sm:$0xff] %v504
    // Predicated region
    $region38: #{tpu_custom_call.1} parent=1 // pred_check
      _
    $region39: #{tpu_custom_call.1} parent=1 // pred_check_branch
      %507 = sbr.rel (0) target = $region41
    $region40: #{tpu_custom_call.1} parent=1 // pred_region
      %509 = vsyncadd [#allocation5], 0
      %s511 = sshll.u32 [#allocation12], 4
      %s512 = int_to_ptr.vmem [resolvable:$true] %s511
      %s513 = sshll.u32 %s5, 4
      %s514 = int_to_ptr.hbm [resolvable:$true] %s513
      %516 = dma.vmem_to_hbm [thread:$0]  %s512, 128, %s514, [#allocation5]
    $region41: #{tpu_custom_call.1} parent=1 // pred_fallthru
      _
    // Predicated region
    $region42: #{tpu_custom_call.1} parent=1 // pred_check
      _
    $region43: #{tpu_custom_call.1} parent=1 // pred_check_branch
      %518 = sbr.rel (0) target = $region45
    $region44: #{tpu_custom_call.1} parent=1 // pred_region
      %520 = dma.done [#allocation5], 128
    $region45: #{tpu_custom_call.1} parent=1 // pred_fallthru
      _
    %521 = vsyncpa [#allocation4], 1
    %522 = vsyncpa [#allocation11], 1
    %523 = vsyncpa [#allocation5], 1
    %524 = vsyncpa [#allocation6], 1
    %525 = vsyncpa [#allocation7], 1

</llo_original>
